<compile_context>
chip_gen: v5e
topology: v5e:2x2
jax: 0.10.0
libtpu: 0.0.40
codegen_flags: <defaults>
</compile_context>

<pallas_src>
import math

import jax
import jax.numpy as jnp
from jax.experimental import pallas as pl
from jax.experimental.pallas import tpu as pltpu

_LANES = 1024  # preferred lane-dense last dim (large multiple of 128)


def _round_up(a: int, b: int) -> int:
    return ((a + b - 1) // b) * b


def _chip_config():
    """Return (target_block_bytes, vmem_limit_bytes, min_grid_steps) per TPU gen."""
    vmem = None
    try:
        info = pltpu.get_tpu_info()
        vmem = getattr(info, "vmem_capacity_bytes", None)
    except Exception:
        vmem = None
    if vmem is None:
        vmem = 64 * 1024 * 1024  # conservative default
    if vmem >= 128 * 1024 * 1024:
        # v5e / v6e: 128 MiB VMEM, single TensorCore -> big tiles, no step clamp.
        return 8 * 1024 * 1024, 64 * 1024 * 1024, 1
    # v7x-like: 64 MiB VMEM per core, 2 TensorCores.
    return 4 * 1024 * 1024, 32 * 1024 * 1024, 8


def _scale_kernel(scale_ref, x_ref, o_ref):
    # scale_ref: (1, 1) f32 scalar in SMEM
    # x_ref / o_ref: (block_rows, lanes) VMEM tiles
    s = scale_ref[0, 0].astype(o_ref.dtype)
    o_ref[...] = x_ref[...].astype(o_ref.dtype) * s


def _scale_2d(x2d, scale2d, block_rows, out_dtype, vmem_limit, donate):
    rows, lanes = x2d.shape
    grid = (pl.cdiv(rows, block_rows),)  # ragged last block is masked by Pallas
    in_bytes = rows * lanes * x2d.dtype.itemsize
    out_bytes = rows * lanes * jnp.dtype(out_dtype).itemsize

    kwargs = {}
    if donate and x2d.dtype == jnp.dtype(out_dtype):
        # Optional: alias x2d -> output to avoid a second full-size HBM allocation.
        kwargs["input_output_aliases"] = {1: 0}

    return pl.pallas_call(
        _scale_kernel,
        out_shape=jax.ShapeDtypeStruct((rows, lanes), out_dtype),
        grid=grid,
        in_specs=[
            # scalar parameter: whole (1,1) array in SMEM, same every step
            pl.BlockSpec(memory_space=pltpu.SMEM),
            # data tile: lane-dense block per grid step
            pl.BlockSpec((block_rows, lanes), lambda i: (i, 0)),
        ],
        out_specs=pl.BlockSpec((block_rows, lanes), lambda i: (i, 0)),
        compiler_params=pltpu.CompilerParams(
            dimension_semantics=("parallel",),
            vmem_limit_bytes=vmem_limit,
        ),
        cost_estimate=pl.CostEstimate(
            flops=rows * lanes,
            transcendentals=0,
            bytes_accessed=in_bytes + out_bytes,
        ),
        **kwargs,
    )(scale2d, x2d)


def _pick_lanes(total: int) -> int:
    """Largest 128-multiple lane width that exactly divides `total` (0 if none)."""
    for lanes in (1024, 512, 256, 128):
        if total % lanes == 0:
            return lanes
    return 0


def scale_forward(x: jax.Array, scale: jax.Array, *, donate_input: bool = False):
    """Elementwise multiply of a tensor (any shape) by a 1-element parameter."""
    orig_shape = x.shape
    # PyTorch type promotion: input * float32 Parameter -> promoted dtype
    # (f32 stays f32; bf16 / int inputs produce f32 outputs).
    out_dtype = jnp.promote_types(x.dtype, scale.dtype)
    total = math.prod(orig_shape)
    if total == 0:
        return jnp.zeros(orig_shape, out_dtype)

    target_block_bytes, vmem_limit, min_steps = _chip_config()
    itemsize = max(jnp.dtype(x.dtype).itemsize, jnp.dtype(out_dtype).itemsize)
    scale2d = scale.reshape(1, 1).astype(jnp.float32)
    x_flat = x.reshape(-1)

    lanes = _pick_lanes(total)

    if lanes == 0 and total < _LANES:
        # Tiny awkward size: single full-extent block (masked stores, negligible).
        out2d = _scale_2d(x_flat.reshape(1, total), scale2d, 1, out_dtype,
                          vmem_limit, donate_input)
        return out2d.reshape(orig_shape)

    if lanes == 0:
        # Large but not a multiple of 128 (rare): kernel on the 1024-aligned bulk,
        # plain-JAX multiply for the <1024-element tail.  Avoids padding and
        # slicing the entire array (each would be a full extra HBM pass).
        bulk = (total // _LANES) * _LANES
        bulk_out = scale_forward(x_flat[:bulk], scale)
        tail_out = x_flat[bulk:].astype(out_dtype) * scale.astype(out_dtype).reshape(())
        return jnp.concatenate([bulk_out, tail_out]).reshape(orig_shape)

    rows = total // lanes
    x2d = x_flat.reshape(rows, lanes)  # no pad, no output slice

    if rows <= 8:
        block_rows = rows  # full-extent sublane dim is allowed even when < 8
    else:
        # Generation-sized tiles (~4 MiB v7x, ~8 MiB v5e/v6e), multiple of 8 rows.
        block_rows = max(8, target_block_bytes // (lanes * itemsize))
        block_rows = _round_up(block_rows, 8)
        block_rows = min(block_rows, (rows // 8) * 8)
        if min_steps > 1 and rows >= 8 * min_steps:
            # v7x: keep >= min_steps grid steps so both TensorCores stream and
            # inbound/outbound DMAs of adjacent steps overlap.
            cap = _round_up(pl.cdiv(rows, min_steps), 8)
            block_rows = max(8, min(block_rows, cap))

    out2d = _scale_2d(x2d, scale2d, block_rows, out_dtype, vmem_limit, donate_input)
    return out2d.reshape(orig_shape)


if __name__ == "__main__":
    key = jax.random.PRNGKey(0)

    # Small NCHW input, consistent with how Scale is used on conv feature maps.
    x = jax.random.normal(key, (2, 4, 16, 16), dtype=jnp.float32)

    # Deterministic parameter init, mirroring nn.Parameter(torch.FloatTensor([0.001])).
    init_value = 0.001
    scale = jnp.array([init_value], dtype=jnp.float32)

    out = scale_forward(x, scale)
    out = jax.block_until_ready(out)

    # Sanity check against the reference semantics.
    ref = x * scale[0]
    assert out.shape == x.shape and out.dtype == x.dtype
    assert jnp.allclose(out, ref, atol=1e-6, rtol=1e-6)

    print("KERNEL_OK")
</pallas_src>

<mosaic_0001>
module attributes {stable_mosaic.version = 11 : i64} {
  func.func @_scale_kernel(%arg0: i32, %arg1: memref<1x1xf32, #tpu.memory_space<smem>>, %arg2: memref<2x1024xf32, #tpu.memory_space<vmem>>, %arg3: memref<2x1024xf32, #tpu.memory_space<vmem>>) attributes {dimension_semantics = [#tpu.dimension_semantics<parallel>], iteration_bounds = array<i64: 1>, scalar_prefetch = 0 : i64, scratch_operands = 0 : i64, tpu.core_type = #tpu.core_type<tc>, window_params = [{transform_indices = @transform_0, window_bounds = array<i64: 1, 1>}, {transform_indices = @transform_1, window_bounds = array<i64: 2, 1024>}, {transform_indices = @transform_2, window_bounds = array<i64: 2, 1024>}]} {
    %c0 = arith.constant 0 : index
    %c0_0 = arith.constant 0 : index
    %0 = memref.load %arg1[%c0, %c0_0] : memref<1x1xf32, #tpu.memory_space<smem>>
    %c0_1 = arith.constant 0 : index
    %c0_2 = arith.constant 0 : index
    %1 = vector.load %arg2[%c0_1, %c0_2] : memref<2x1024xf32, #tpu.memory_space<vmem>>, vector<2x1024xf32>
    %2 = vector.broadcast %0 : f32 to vector<2x1024xf32>
    %3 = arith.mulf %1, %2 : vector<2x1024xf32>
    %c0_3 = arith.constant 0 : index
    %c0_4 = arith.constant 0 : index
    %4 = vector.load %arg3[%c0_3, %c0_4] : memref<2x1024xf32, #tpu.memory_space<vmem>>, vector<2x1024xf32>
    tpu.vector_store %arg3[%c0_3, %c0_4], %3 {strides = array<i32>} : memref<2x1024xf32, #tpu.memory_space<vmem>>, vector<2x1024xf32>,
    return
  }
  func.func @transform_0(%arg0: i32) -> (i32, i32) {
    %c0_i32 = arith.constant 0 : i32
    %c0_i32_0 = arith.constant 0 : i32
    %c0_i32_1 = arith.constant 0 : i32
    return %c0_i32, %c0_i32_0 : i32, i32
  }
  func.func @transform_1(%arg0: i32) -> (i32, i32) {
    %c0_i32 = arith.constant 0 : i32
    %c0_i32_0 = arith.constant 0 : i32
    return %arg0, %c0_i32 : i32, i32
  }
  func.func @transform_2(%arg0: i32) -> (i32, i32) {
    %c0_i32 = arith.constant 0 : i32
    %c0_i32_0 = arith.constant 0 : i32
    return %arg0, %c0_i32 : i32, i32
  }
}

</mosaic_0001>

<llo_original>
// kernel: tpu_custom_call.1
$region0: #{tpu_custom_call.1}
  #allocation0 [shape = 'u32[]', space=smem, size = 0x4, offset = 0x4, fixed_abs, tag = 'smem constant byte address 0x4 - core index']
  #allocation1 [shape = 'u32[72,128]{1,0:T(1,128)}', space=vmem, size = 0x9000, scoped, tag = 'internal scratch']
  #allocation2 [shape = 'f32[1,1]{1,0:T(1,128)S(6)}', space=smem, size = 0x200, scoped, tag = 'scoped memory for tpu_custom_call.1']
  %s0 = inlined_call_operand.<no memory space> [shape: f32[1,1], index: 0, kind: input, shape index: {}]
  %s1 = inlined_call_operand.hbm [shape: f32[2,1024], index: 1, kind: input, shape index: {}]
  %s2 = inlined_call_operand.hbm [shape: f32[2,1024], index: 2, kind: output, shape index: {}]
  %s3 = sld [smem:[#allocation0]]
  $region22: #{tpu_custom_call.1} parent=0
    _
  %s5 = ssub.s32 1, %s3
  %s6 = scalar_select 0, %s5, %s3
  %7 = sst [smem:[#allocation2]] %s0
  $region1: #{tpu_custom_call.1} parent=0
    #allocation3 [shape = 'u8[8192]{0}', space=vmem, size = 0x2000, scoped, tag = 'input window, operand 1, single buffered']
    #allocation4 [shape = 's32[1]{0}', space=sflag, size = 0x4, scoped, tag = 'scoped memory for tpu_custom_call.1']
    #allocation5 [shape = 's32[1]{0}', space=sflag, size = 0x4, scoped, tag = 'scoped memory for tpu_custom_call.1']
    #allocation6 [shape = 'u8[8192]{0}', space=vmem, size = 0x2000, scoped, tag = 'output window, operand 0, single buffered']
    %8 = vsyncpa [#allocation4], 0
    %9 = vsyncpa [#allocation5], 0
    // Predicated region
    $region2: #{tpu_custom_call.1} parent=1 // pred_check
      _
    $region3: #{tpu_custom_call.1} parent=1 // pred_check_branch
      %11 = sbr.rel (0) target = $region5
    $region4: #{tpu_custom_call.1} parent=1 // pred_region
      _
    $region5: #{tpu_custom_call.1} parent=1 // pred_fallthru
      _
    // Predicated region
    $region6: #{tpu_custom_call.1} parent=1 // pred_check
      _
    $region7: #{tpu_custom_call.1} parent=1 // pred_check_branch
      %13 = sbr.rel (0) target = $region9
    $region8: #{tpu_custom_call.1} parent=1 // pred_region
      %15 = vsyncadd [#allocation4], 0
      %s17 = sshll.u32 %s1, 4
      %s18 = int_to_ptr.hbm [resolvable:$true] %s17
      %s19 = sshll.u32 [#allocation3], 4
      %s20 = int_to_ptr.vmem [resolvable:$true] %s19
      %22 = dma.hbm_to_vmem [thread:$0]  %s18, 256, %s20, [#allocation4]
    $region9: #{tpu_custom_call.1} parent=1 // pred_fallthru
      _
    // Predicated region
    $region10: #{tpu_custom_call.1} parent=1 // pred_check
      _
    $region11: #{tpu_custom_call.1} parent=1 // pred_check_branch
      %24 = sbr.rel (0) target = $region13
    $region12: #{tpu_custom_call.1} parent=1 // pred_region
      %26 = dma.done [#allocation4], 256
    $region13: #{tpu_custom_call.1} parent=1 // pred_fallthru
      _
    %s27 = sld [smem:[#allocation2]]
    %v28 = vld [vmem:[#allocation3] sm:$0xff]
    %v29 = vld [vmem:[#allocation3 + $0x8] sm:$0xff]
    %v30 = vstv %s27
    %v31 = vmul.f32 %v28, %v30
    %v32 = vmul.f32 %v29, %v30
    %33 = vst [vmem:[#allocation6] sm:$0xff] %v31
    %34 = vst [vmem:[#allocation6 + $0x8] sm:$0xff] %v32
    // Predicated region
    $region14: #{tpu_custom_call.1} parent=1 // pred_check
      _
    $region15: #{tpu_custom_call.1} parent=1 // pred_check_branch
      %36 = sbr.rel (0) target = $region17
    $region16: #{tpu_custom_call.1} parent=1 // pred_region
      %38 = vsyncadd [#allocation5], 0
      %s40 = sshll.u32 [#allocation6], 4
      %s41 = int_to_ptr.vmem [resolvable:$true] %s40
      %s42 = sshll.u32 %s2, 4
      %s43 = int_to_ptr.hbm [resolvable:$true] %s42
      %45 = dma.vmem_to_hbm [thread:$0]  %s41, 256, %s43, [#allocation5]
    $region17: #{tpu_custom_call.1} parent=1 // pred_fallthru
      _
    // Predicated region
    $region18: #{tpu_custom_call.1} parent=1 // pred_check
      _
    $region19: #{tpu_custom_call.1} parent=1 // pred_check_branch
      %47 = sbr.rel (0) target = $region21
    $region20: #{tpu_custom_call.1} parent=1 // pred_region
      %49 = dma.done [#allocation5], 256
    $region21: #{tpu_custom_call.1} parent=1 // pred_fallthru
      _
    %50 = vsyncpa [#allocation4], 1
    %51 = vsyncpa [#allocation5], 1

</llo_original>
